<compile_context>
chip_gen: v6e
topology: v6e:2x2x1
jax: 0.10.0
libtpu: 0.0.40
codegen_flags: <defaults>
</compile_context>

<pallas_src>
import jax
import jax.numpy as jnp
from jax.experimental import pallas as pl
from jax.experimental.pallas import tpu as pltpu


def _lstm_recurrence_kernel(xp_ref, whh_ref, o_ref):
    """Recurrent part of one LSTM layer, whole sequence in one kernel invocation.

    xp_ref : (S, B, 4H)  precomputed X @ W_ih + (b_ih + b_hh), gate order (i,f,o,g)
    whh_ref: (H, 4H)     hidden->gate weights (gate-fused along lanes)
    o_ref  : (S, B, H)   hidden-state outputs h_t for every timestep
    """
    S, B, _ = xp_ref.shape
    H = whh_ref.shape[0]

    # Hoist the (H, 4H) weight load out of the time loop (loop-invariant).
    whh = whh_ref[...]

    def step(t, carry):
        h_prev, c_prev = carry
        # Single fused MXU matmul per step: (B, H) x (H, 4H) -> (B, 4H).
        gates = xp_ref[t] + jnp.dot(h_prev, whh,
                                    preferred_element_type=jnp.float32)
        # Gate order (i, f, o, g): one sigmoid over (B, 3H), one tanh over (B, H).
        sig = jax.nn.sigmoid(gates[:, : 3 * H])
        g_g = jnp.tanh(gates[:, 3 * H:])
        i_g = sig[:, :H]
        f_g = sig[:, H: 2 * H]
        o_g = sig[:, 2 * H:]

        c_new = f_g * c_prev + i_g * g_g
        h_new = o_g * jnp.tanh(c_new)

        # Store into the VMEM-resident output slab; the HBM writeback happens
        # once, lane-dense, at kernel exit.
        o_ref[t] = h_new.astype(o_ref.dtype)
        return (h_new, c_new)

    h0 = jnp.zeros((B, H), jnp.float32)
    c0 = jnp.zeros((B, H), jnp.float32)
    # Partially unroll the (strictly sequential) recurrence: removes per-iter
    # loop overhead and widens the LLO scheduling window.
    unroll = S if S <= 16 else 4
    jax.lax.fori_loop(0, S, step, (h0, c0), unroll=unroll)


def lstm_recurrence_pallas(xp_tm, w_hh):
    """xp_tm: (S, B, 4H) projected inputs (time-major); returns h: (S, B, H)."""
    S, B, _ = xp_tm.shape
    H = w_hh.shape[0]
    return pl.pallas_call(
        _lstm_recurrence_kernel,
        out_shape=jax.ShapeDtypeStruct((S, B, H), jnp.float32),
        in_specs=[
            pl.BlockSpec(memory_space=pltpu.MemorySpace.VMEM),  # xp (VMEM resident)
            pl.BlockSpec(memory_space=pltpu.MemorySpace.VMEM),  # W_hh (VMEM resident)
        ],
        out_specs=pl.BlockSpec(memory_space=pltpu.MemorySpace.VMEM),
    )(xp_tm, w_hh)


@jax.jit
def question_embedding2_forward(inp, params):
    """QuestionEmbedding2.forward: stacked unidirectional LSTM, zero init (h, c).

    inp: (batch, seq, input_dim) -> output: (batch, seq, hidden).
    params: list of (w_ih (D,4H), w_hh (H,4H), bias (4H,)) per layer,
            gate order (i, f, o, g).
    """
    x_tm = jnp.swapaxes(inp, 0, 1)  # (S, B, D) time-major
    for (w_ih, w_hh, bias) in params:
        # Input projection hoisted out of the recurrence: one big MXU matmul
        # over all timesteps (M = S*B), done in XLA.
        xp = jnp.einsum("sbd,dg->sbg", x_tm, w_ih,
                        preferred_element_type=jnp.float32) + bias
        x_tm = lstm_recurrence_pallas(xp, w_hh)
    return jnp.swapaxes(x_tm, 0, 1)  # (B, S, H)


def init_lstm_params(key, input_dim, hidden, num_layers):
    """Deterministic PyTorch-style init: U(-1/sqrt(H), 1/sqrt(H)).

    Weights are stored gate-fused: W_ih (d_in, 4H), W_hh (H, 4H), bias (4H,)
    with gate order (i, f, o, g). A real PyTorch checkpoint would be converted
    by splitting its (4H, d_in) weights per gate, permuting i,f,g,o -> i,f,o,g,
    transposing, concatenating, and summing the two biases: bias = b_ih + b_hh.
    """
    bound = 1.0 / float(jnp.sqrt(jnp.float32(hidden)))
    params = []
    for layer in range(num_layers):
        d_in = input_dim if layer == 0 else hidden
        key, k1, k2, k3, k4 = jax.random.split(key, 5)
        w_ih = jax.random.uniform(k1, (d_in, 4 * hidden), jnp.float32, -bound, bound)
        w_hh = jax.random.uniform(k2, (hidden, 4 * hidden), jnp.float32, -bound, bound)
        b_ih = jax.random.uniform(k3, (4 * hidden,), jnp.float32, -bound, bound)
        b_hh = jax.random.uniform(k4, (4 * hidden,), jnp.float32, -bound, bound)
        params.append((w_ih, w_hh, b_ih + b_hh))
    return params


def lstm_reference(inp, params):
    """Pure-JAX reference (lax.scan) using the same fused-gate weight layout."""
    out = inp  # (B, S, D)
    B = inp.shape[0]
    for (w_ih, w_hh, bias) in params:
        H = w_hh.shape[0]
        xs = jnp.swapaxes(out, 0, 1)                      # (S, B, D)
        xp = jnp.einsum("sbd,dg->sbg", xs, w_ih) + bias   # (S, B, 4H)

        def step(carry, x_t, w_hh=w_hh, H=H):
            h, c = carry
            gates = x_t + h @ w_hh
            i = jax.nn.sigmoid(gates[:, :H])
            f = jax.nn.sigmoid(gates[:, H: 2 * H])
            o = jax.nn.sigmoid(gates[:, 2 * H: 3 * H])
            g = jnp.tanh(gates[:, 3 * H:])
            c = f * c + i * g
            h = o * jnp.tanh(c)
            return (h, c), h

        h0 = jnp.zeros((B, H), jnp.float32)
        c0 = jnp.zeros((B, H), jnp.float32)
        _, ys = jax.lax.scan(step, (h0, c0), xp)
        out = jnp.swapaxes(ys, 0, 1)                      # (B, S, H)
    return out


if __name__ == "__main__":
    batch, seq, input_dim, hidden, num_layers = 2, 8, 32, 32, 2

    key = jax.random.PRNGKey(0)
    key, kx, kp = jax.random.split(key, 3)
    inp = jax.random.normal(kx, (batch, seq, input_dim), jnp.float32)
    params = init_lstm_params(kp, input_dim, hidden, num_layers)

    out = question_embedding2_forward(inp, params)
    out = jax.block_until_ready(out)

    ref = lstm_reference(inp, params)
    assert out.shape == (batch, seq, hidden)
    assert jnp.allclose(out, ref, atol=1e-5, rtol=1e-5), "mismatch vs reference"

    print("KERNEL_OK")
</pallas_src>

<mosaic_0001>
module attributes {stable_mosaic.version = 11 : i64} {
  func.func @_lstm_recurrence_kernel(%arg0: memref<8x2x128xf32, #tpu.memory_space<vmem>>, %arg1: memref<32x128xf32, #tpu.memory_space<vmem>>, %arg2: memref<8x2x32xf32, #tpu.memory_space<vmem>>) attributes {dimension_semantics = [], scalar_prefetch = 0 : i64, scratch_operands = 0 : i64, tpu.core_type = #tpu.core_type<tc>} {
    %c0 = arith.constant 0 : index
    %c0_0 = arith.constant 0 : index
    %0 = vector.load %arg1[%c0, %c0_0] : memref<32x128xf32, #tpu.memory_space<vmem>>, vector<32x128xf32>
    %cst = arith.constant 0.000000e+00 : f32
    %1 = vector.broadcast %cst : f32 to vector<2x32xf32>
    %cst_1 = arith.constant 0.000000e+00 : f32
    %2 = vector.broadcast %cst_1 : f32 to vector<2x32xf32>
    %c0_i32 = arith.constant 0 : i32
    %3 = arith.index_cast %c0_i32 : i32 to index
    %c0_2 = arith.constant 0 : index
    %c0_3 = arith.constant 0 : index
    %4 = vector.load %arg0[%3, %c0_2, %c0_3] : memref<8x2x128xf32, #tpu.memory_space<vmem>>, vector<1x2x128xf32>
    %5 = vector.shape_cast %4 : vector<1x2x128xf32> to vector<2x128xf32>
    %cst_4 = arith.constant dense<0.000000e+00> : vector<2x128xf32>
    %6 = tpu.matmul %1, %0, %cst_4 {dimension_numbers = #tpu.dot_dimension_numbers<[1], [0], [0], [1], [0, 0, 1, 1], [], []>} : vector<2x32xf32>, vector<32x128xf32>, vector<2x128xf32> -> vector<2x128xf32>
    %7 = arith.addf %5, %6 : vector<2x128xf32>
    %8 = vector.extract_strided_slice %7 {offsets = [0, 0], sizes = [2, 96], strides = [1, 1]} : vector<2x128xf32> to vector<2x96xf32>
    %9 = arith.negf %8 : vector<2x96xf32>
    %10 = math.exp %9 : vector<2x96xf32>
    %cst_5 = arith.constant 1.000000e+00 : f32
    %11 = vector.broadcast %cst_5 : f32 to vector<2x96xf32>
    %12 = arith.addf %11, %10 : vector<2x96xf32>
    %13 = arith.divf %11, %12 : vector<2x96xf32>
    %14 = vector.extract_strided_slice %7 {offsets = [0, 96], sizes = [2, 32], strides = [1, 1]} : vector<2x128xf32> to vector<2x32xf32>
    %15 = math.tanh %14 : vector<2x32xf32>
    %16 = vector.extract_strided_slice %13 {offsets = [0, 0], sizes = [2, 32], strides = [1, 1]} : vector<2x96xf32> to vector<2x32xf32>
    %17 = vector.extract_strided_slice %13 {offsets = [0, 32], sizes = [2, 32], strides = [1, 1]} : vector<2x96xf32> to vector<2x32xf32>
    %18 = vector.extract_strided_slice %13 {offsets = [0, 64], sizes = [2, 32], strides = [1, 1]} : vector<2x96xf32> to vector<2x32xf32>
    %19 = arith.mulf %17, %2 : vector<2x32xf32>
    %20 = arith.mulf %16, %15 : vector<2x32xf32>
    %21 = arith.addf %19, %20 : vector<2x32xf32>
    %22 = math.tanh %21 : vector<2x32xf32>
    %23 = arith.mulf %18, %22 : vector<2x32xf32>
    %24 = arith.index_cast %c0_i32 : i32 to index
    %c0_6 = arith.constant 0 : index
    %c0_7 = arith.constant 0 : index
    %25 = vector.load %arg2[%24, %c0_6, %c0_7] : memref<8x2x32xf32, #tpu.memory_space<vmem>>, vector<1x2x32xf32>
    %26 = vector.shape_cast %25 : vector<1x2x32xf32> to vector<2x32xf32>
    %27 = vector.shape_cast %23 : vector<2x32xf32> to vector<1x2x32xf32>
    tpu.vector_store %arg2[%24, %c0_6, %c0_7], %27 {strides = array<i32>} : memref<8x2x32xf32, #tpu.memory_space<vmem>>, vector<1x2x32xf32>,
    %c1_i32 = arith.constant 1 : i32
    %28 = arith.index_cast %c1_i32 : i32 to index
    %c0_8 = arith.constant 0 : index
    %c0_9 = arith.constant 0 : index
    %29 = vector.load %arg0[%28, %c0_8, %c0_9] : memref<8x2x128xf32, #tpu.memory_space<vmem>>, vector<1x2x128xf32>
    %30 = vector.shape_cast %29 : vector<1x2x128xf32> to vector<2x128xf32>
    %cst_10 = arith.constant dense<0.000000e+00> : vector<2x128xf32>
    %31 = tpu.matmul %23, %0, %cst_10 {dimension_numbers = #tpu.dot_dimension_numbers<[1], [0], [0], [1], [0, 0, 1, 1], [], []>} : vector<2x32xf32>, vector<32x128xf32>, vector<2x128xf32> -> vector<2x128xf32>
    %32 = arith.addf %30, %31 : vector<2x128xf32>
    %33 = vector.extract_strided_slice %32 {offsets = [0, 0], sizes = [2, 96], strides = [1, 1]} : vector<2x128xf32> to vector<2x96xf32>
    %34 = arith.negf %33 : vector<2x96xf32>
    %35 = math.exp %34 : vector<2x96xf32>
    %cst_11 = arith.constant 1.000000e+00 : f32
    %36 = vector.broadcast %cst_11 : f32 to vector<2x96xf32>
    %37 = arith.addf %36, %35 : vector<2x96xf32>
    %38 = arith.divf %36, %37 : vector<2x96xf32>
    %39 = vector.extract_strided_slice %32 {offsets = [0, 96], sizes = [2, 32], strides = [1, 1]} : vector<2x128xf32> to vector<2x32xf32>
    %40 = math.tanh %39 : vector<2x32xf32>
    %41 = vector.extract_strided_slice %38 {offsets = [0, 0], sizes = [2, 32], strides = [1, 1]} : vector<2x96xf32> to vector<2x32xf32>
    %42 = vector.extract_strided_slice %38 {offsets = [0, 32], sizes = [2, 32], strides = [1, 1]} : vector<2x96xf32> to vector<2x32xf32>
    %43 = vector.extract_strided_slice %38 {offsets = [0, 64], sizes = [2, 32], strides = [1, 1]} : vector<2x96xf32> to vector<2x32xf32>
    %44 = arith.mulf %42, %21 : vector<2x32xf32>
    %45 = arith.mulf %41, %40 : vector<2x32xf32>
    %46 = arith.addf %44, %45 : vector<2x32xf32>
    %47 = math.tanh %46 : vector<2x32xf32>
    %48 = arith.mulf %43, %47 : vector<2x32xf32>
    %49 = arith.index_cast %c1_i32 : i32 to index
    %c0_12 = arith.constant 0 : index
    %c0_13 = arith.constant 0 : index
    %50 = vector.load %arg2[%49, %c0_12, %c0_13] : memref<8x2x32xf32, #tpu.memory_space<vmem>>, vector<1x2x32xf32>
    %51 = vector.shape_cast %50 : vector<1x2x32xf32> to vector<2x32xf32>
    %52 = vector.shape_cast %48 : vector<2x32xf32> to vector<1x2x32xf32>
    tpu.vector_store %arg2[%49, %c0_12, %c0_13], %52 {strides = array<i32>} : memref<8x2x32xf32, #tpu.memory_space<vmem>>, vector<1x2x32xf32>,
    %c2_i32 = arith.constant 2 : i32
    %53 = arith.index_cast %c2_i32 : i32 to index
    %c0_14 = arith.constant 0 : index
    %c0_15 = arith.constant 0 : index
    %54 = vector.load %arg0[%53, %c0_14, %c0_15] : memref<8x2x128xf32, #tpu.memory_space<vmem>>, vector<1x2x128xf32>
    %55 = vector.shape_cast %54 : vector<1x2x128xf32> to vector<2x128xf32>
    %cst_16 = arith.constant dense<0.000000e+00> : vector<2x128xf32>
    %56 = tpu.matmul %48, %0, %cst_16 {dimension_numbers = #tpu.dot_dimension_numbers<[1], [0], [0], [1], [0, 0, 1, 1], [], []>} : vector<2x32xf32>, vector<32x128xf32>, vector<2x128xf32> -> vector<2x128xf32>
    %57 = arith.addf %55, %56 : vector<2x128xf32>
    %58 = vector.extract_strided_slice %57 {offsets = [0, 0], sizes = [2, 96], strides = [1, 1]} : vector<2x128xf32> to vector<2x96xf32>
    %59 = arith.negf %58 : vector<2x96xf32>
    %60 = math.exp %59 : vector<2x96xf32>
    %cst_17 = arith.constant 1.000000e+00 : f32
    %61 = vector.broadcast %cst_17 : f32 to vector<2x96xf32>
    %62 = arith.addf %61, %60 : vector<2x96xf32>
    %63 = arith.divf %61, %62 : vector<2x96xf32>
    %64 = vector.extract_strided_slice %57 {offsets = [0, 96], sizes = [2, 32], strides = [1, 1]} : vector<2x128xf32> to vector<2x32xf32>
    %65 = math.tanh %64 : vector<2x32xf32>
    %66 = vector.extract_strided_slice %63 {offsets = [0, 0], sizes = [2, 32], strides = [1, 1]} : vector<2x96xf32> to vector<2x32xf32>
    %67 = vector.extract_strided_slice %63 {offsets = [0, 32], sizes = [2, 32], strides = [1, 1]} : vector<2x96xf32> to vector<2x32xf32>
    %68 = vector.extract_strided_slice %63 {offsets = [0, 64], sizes = [2, 32], strides = [1, 1]} : vector<2x96xf32> to vector<2x32xf32>
    %69 = arith.mulf %67, %46 : vector<2x32xf32>
    %70 = arith.mulf %66, %65 : vector<2x32xf32>
    %71 = arith.addf %69, %70 : vector<2x32xf32>
    %72 = math.tanh %71 : vector<2x32xf32>
    %73 = arith.mulf %68, %72 : vector<2x32xf32>
    %74 = arith.index_cast %c2_i32 : i32 to index
    %c0_18 = arith.constant 0 : index
    %c0_19 = arith.constant 0 : index
    %75 = vector.load %arg2[%74, %c0_18, %c0_19] : memref<8x2x32xf32, #tpu.memory_space<vmem>>, vector<1x2x32xf32>
    %76 = vector.shape_cast %75 : vector<1x2x32xf32> to vector<2x32xf32>
    %77 = vector.shape_cast %73 : vector<2x32xf32> to vector<1x2x32xf32>
    tpu.vector_store %arg2[%74, %c0_18, %c0_19], %77 {strides = array<i32>} : memref<8x2x32xf32, #tpu.memory_space<vmem>>, vector<1x2x32xf32>,
    %c3_i32 = arith.constant 3 : i32
    %78 = arith.index_cast %c3_i32 : i32 to index
    %c0_20 = arith.constant 0 : index
    %c0_21 = arith.constant 0 : index
    %79 = vector.load %arg0[%78, %c0_20, %c0_21] : memref<8x2x128xf32, #tpu.memory_space<vmem>>, vector<1x2x128xf32>
    %80 = vector.shape_cast %79 : vector<1x2x128xf32> to vector<2x128xf32>
    %cst_22 = arith.constant dense<0.000000e+00> : vector<2x128xf32>
    %81 = tpu.matmul %73, %0, %cst_22 {dimension_numbers = #tpu.dot_dimension_numbers<[1], [0], [0], [1], [0, 0, 1, 1], [], []>} : vector<2x32xf32>, vector<32x128xf32>, vector<2x128xf32> -> vector<2x128xf32>
    %82 = arith.addf %80, %81 : vector<2x128xf32>
    %83 = vector.extract_strided_slice %82 {offsets = [0, 0], sizes = [2, 96], strides = [1, 1]} : vector<2x128xf32> to vector<2x96xf32>
    %84 = arith.negf %83 : vector<2x96xf32>
    %85 = math.exp %84 : vector<2x96xf32>
    %cst_23 = arith.constant 1.000000e+00 : f32
    %86 = vector.broadcast %cst_23 : f32 to vector<2x96xf32>
    %87 = arith.addf %86, %85 : vector<2x96xf32>
    %88 = arith.divf %86, %87 : vector<2x96xf32>
    %89 = vector.extract_strided_slice %82 {offsets = [0, 96], sizes = [2, 32], strides = [1, 1]} : vector<2x128xf32> to vector<2x32xf32>
    %90 = math.tanh %89 : vector<2x32xf32>
    %91 = vector.extract_strided_slice %88 {offsets = [0, 0], sizes = [2, 32], strides = [1, 1]} : vector<2x96xf32> to vector<2x32xf32>
    %92 = vector.extract_strided_slice %88 {offsets = [0, 32], sizes = [2, 32], strides = [1, 1]} : vector<2x96xf32> to vector<2x32xf32>
    %93 = vector.extract_strided_slice %88 {offsets = [0, 64], sizes = [2, 32], strides = [1, 1]} : vector<2x96xf32> to vector<2x32xf32>
    %94 = arith.mulf %92, %71 : vector<2x32xf32>
    %95 = arith.mulf %91, %90 : vector<2x32xf32>
    %96 = arith.addf %94, %95 : vector<2x32xf32>
    %97 = math.tanh %96 : vector<2x32xf32>
    %98 = arith.mulf %93, %97 : vector<2x32xf32>
    %99 = arith.index_cast %c3_i32 : i32 to index
    %c0_24 = arith.constant 0 : index
    %c0_25 = arith.constant 0 : index
    %100 = vector.load %arg2[%99, %c0_24, %c0_25] : memref<8x2x32xf32, #tpu.memory_space<vmem>>, vector<1x2x32xf32>
    %101 = vector.shape_cast %100 : vector<1x2x32xf32> to vector<2x32xf32>
    %102 = vector.shape_cast %98 : vector<2x32xf32> to vector<1x2x32xf32>
    tpu.vector_store %arg2[%99, %c0_24, %c0_25], %102 {strides = array<i32>} : memref<8x2x32xf32, #tpu.memory_space<vmem>>, vector<1x2x32xf32>,
    %c4_i32 = arith.constant 4 : i32
    %103 = arith.index_cast %c4_i32 : i32 to index
    %c0_26 = arith.constant 0 : index
    %c0_27 = arith.constant 0 : index
    %104 = vector.load %arg0[%103, %c0_26, %c0_27] : memref<8x2x128xf32, #tpu.memory_space<vmem>>, vector<1x2x128xf32>
    %105 = vector.shape_cast %104 : vector<1x2x128xf32> to vector<2x128xf32>
    %cst_28 = arith.constant dense<0.000000e+00> : vector<2x128xf32>
    %106 = tpu.matmul %98, %0, %cst_28 {dimension_numbers = #tpu.dot_dimension_numbers<[1], [0], [0], [1], [0, 0, 1, 1], [], []>} : vector<2x32xf32>, vector<32x128xf32>, vector<2x128xf32> -> vector<2x128xf32>
    %107 = arith.addf %105, %106 : vector<2x128xf32>
    %108 = vector.extract_strided_slice %107 {offsets = [0, 0], sizes = [2, 96], strides = [1, 1]} : vector<2x128xf32> to vector<2x96xf32>
    %109 = arith.negf %108 : vector<2x96xf32>
    %110 = math.exp %109 : vector<2x96xf32>
    %cst_29 = arith.constant 1.000000e+00 : f32
    %111 = vector.broadcast %cst_29 : f32 to vector<2x96xf32>
    %112 = arith.addf %111, %110 : vector<2x96xf32>
    %113 = arith.divf %111, %112 : vector<2x96xf32>
    %114 = vector.extract_strided_slice %107 {offsets = [0, 96], sizes = [2, 32], strides = [1, 1]} : vector<2x128xf32> to vector<2x32xf32>
    %115 = math.tanh %114 : vector<2x32xf32>
    %116 = vector.extract_strided_slice %113 {offsets = [0, 0], sizes = [2, 32], strides = [1, 1]} : vector<2x96xf32> to vector<2x32xf32>
    %117 = vector.extract_strided_slice %113 {offsets = [0, 32], sizes = [2, 32], strides = [1, 1]} : vector<2x96xf32> to vector<2x32xf32>
    %118 = vector.extract_strided_slice %113 {offsets = [0, 64], sizes = [2, 32], strides = [1, 1]} : vector<2x96xf32> to vector<2x32xf32>
    %119 = arith.mulf %117, %96 : vector<2x32xf32>
    %120 = arith.mulf %116, %115 : vector<2x32xf32>
    %121 = arith.addf %119, %120 : vector<2x32xf32>
    %122 = math.tanh %121 : vector<2x32xf32>
    %123 = arith.mulf %118, %122 : vector<2x32xf32>
    %124 = arith.index_cast %c4_i32 : i32 to index
    %c0_30 = arith.constant 0 : index
    %c0_31 = arith.constant 0 : index
    %125 = vector.load %arg2[%124, %c0_30, %c0_31] : memref<8x2x32xf32, #tpu.memory_space<vmem>>, vector<1x2x32xf32>
    %126 = vector.shape_cast %125 : vector<1x2x32xf32> to vector<2x32xf32>
    %127 = vector.shape_cast %123 : vector<2x32xf32> to vector<1x2x32xf32>
    tpu.vector_store %arg2[%124, %c0_30, %c0_31], %127 {strides = array<i32>} : memref<8x2x32xf32, #tpu.memory_space<vmem>>, vector<1x2x32xf32>,
    %c5_i32 = arith.constant 5 : i32
    %128 = arith.index_cast %c5_i32 : i32 to index
    %c0_32 = arith.constant 0 : index
    %c0_33 = arith.constant 0 : index
    %129 = vector.load %arg0[%128, %c0_32, %c0_33] : memref<8x2x128xf32, #tpu.memory_space<vmem>>, vector<1x2x128xf32>
    %130 = vector.shape_cast %129 : vector<1x2x128xf32> to vector<2x128xf32>
    %cst_34 = arith.constant dense<0.000000e+00> : vector<2x128xf32>
    %131 = tpu.matmul %123, %0, %cst_34 {dimension_numbers = #tpu.dot_dimension_numbers<[1], [0], [0], [1], [0, 0, 1, 1], [], []>} : vector<2x32xf32>, vector<32x128xf32>, vector<2x128xf32> -> vector<2x128xf32>
    %132 = arith.addf %130, %131 : vector<2x128xf32>
    %133 = vector.extract_strided_slice %132 {offsets = [0, 0], sizes = [2, 96], strides = [1, 1]} : vector<2x128xf32> to vector<2x96xf32>
    %134 = arith.negf %133 : vector<2x96xf32>
    %135 = math.exp %134 : vector<2x96xf32>
    %cst_35 = arith.constant 1.000000e+00 : f32
    %136 = vector.broadcast %cst_35 : f32 to vector<2x96xf32>
    %137 = arith.addf %136, %135 : vector<2x96xf32>
    %138 = arith.divf %136, %137 : vector<2x96xf32>
    %139 = vector.extract_strided_slice %132 {offsets = [0, 96], sizes = [2, 32], strides = [1, 1]} : vector<2x128xf32> to vector<2x32xf32>
    %140 = math.tanh %139 : vector<2x32xf32>
    %141 = vector.extract_strided_slice %138 {offsets = [0, 0], sizes = [2, 32], strides = [1, 1]} : vector<2x96xf32> to vector<2x32xf32>
    %142 = vector.extract_strided_slice %138 {offsets = [0, 32], sizes = [2, 32], strides = [1, 1]} : vector<2x96xf32> to vector<2x32xf32>
    %143 = vector.extract_strided_slice %138 {offsets = [0, 64], sizes = [2, 32], strides = [1, 1]} : vector<2x96xf32> to vector<2x32xf32>
    %144 = arith.mulf %142, %121 : vector<2x32xf32>
    %145 = arith.mulf %141, %140 : vector<2x32xf32>
    %146 = arith.addf %144, %145 : vector<2x32xf32>
    %147 = math.tanh %146 : vector<2x32xf32>
    %148 = arith.mulf %143, %147 : vector<2x32xf32>
    %149 = arith.index_cast %c5_i32 : i32 to index
    %c0_36 = arith.constant 0 : index
    %c0_37 = arith.constant 0 : index
    %150 = vector.load %arg2[%149, %c0_36, %c0_37] : memref<8x2x32xf32, #tpu.memory_space<vmem>>, vector<1x2x32xf32>
    %151 = vector.shape_cast %150 : vector<1x2x32xf32> to vector<2x32xf32>
    %152 = vector.shape_cast %148 : vector<2x32xf32> to vector<1x2x32xf32>
    tpu.vector_store %arg2[%149, %c0_36, %c0_37], %152 {strides = array<i32>} : memref<8x2x32xf32, #tpu.memory_space<vmem>>, vector<1x2x32xf32>,
    %c6_i32 = arith.constant 6 : i32
    %153 = arith.index_cast %c6_i32 : i32 to index
    %c0_38 = arith.constant 0 : index
    %c0_39 = arith.constant 0 : index
    %154 = vector.load %arg0[%153, %c0_38, %c0_39] : memref<8x2x128xf32, #tpu.memory_space<vmem>>, vector<1x2x128xf32>
    %155 = vector.shape_cast %154 : vector<1x2x128xf32> to vector<2x128xf32>
    %cst_40 = arith.constant dense<0.000000e+00> : vector<2x128xf32>
    %156 = tpu.matmul %148, %0, %cst_40 {dimension_numbers = #tpu.dot_dimension_numbers<[1], [0], [0], [1], [0, 0, 1, 1], [], []>} : vector<2x32xf32>, vector<32x128xf32>, vector<2x128xf32> -> vector<2x128xf32>
    %157 = arith.addf %155, %156 : vector<2x128xf32>
    %158 = vector.extract_strided_slice %157 {offsets = [0, 0], sizes = [2, 96], strides = [1, 1]} : vector<2x128xf32> to vector<2x96xf32>
    %159 = arith.negf %158 : vector<2x96xf32>
    %160 = math.exp %159 : vector<2x96xf32>
    %cst_41 = arith.constant 1.000000e+00 : f32
    %161 = vector.broadcast %cst_41 : f32 to vector<2x96xf32>
    %162 = arith.addf %161, %160 : vector<2x96xf32>
    %163 = arith.divf %161, %162 : vector<2x96xf32>
    %164 = vector.extract_strided_slice %157 {offsets = [0, 96], sizes = [2, 32], strides = [1, 1]} : vector<2x128xf32> to vector<2x32xf32>
    %165 = math.tanh %164 : vector<2x32xf32>
    %166 = vector.extract_strided_slice %163 {offsets = [0, 0], sizes = [2, 32], strides = [1, 1]} : vector<2x96xf32> to vector<2x32xf32>
    %167 = vector.extract_strided_slice %163 {offsets = [0, 32], sizes = [2, 32], strides = [1, 1]} : vector<2x96xf32> to vector<2x32xf32>
    %168 = vector.extract_strided_slice %163 {offsets = [0, 64], sizes = [2, 32], strides = [1, 1]} : vector<2x96xf32> to vector<2x32xf32>
    %169 = arith.mulf %167, %146 : vector<2x32xf32>
    %170 = arith.mulf %166, %165 : vector<2x32xf32>
    %171 = arith.addf %169, %170 : vector<2x32xf32>
    %172 = math.tanh %171 : vector<2x32xf32>
    %173 = arith.mulf %168, %172 : vector<2x32xf32>
    %174 = arith.index_cast %c6_i32 : i32 to index
    %c0_42 = arith.constant 0 : index
    %c0_43 = arith.constant 0 : index
    %175 = vector.load %arg2[%174, %c0_42, %c0_43] : memref<8x2x32xf32, #tpu.memory_space<vmem>>, vector<1x2x32xf32>
    %176 = vector.shape_cast %175 : vector<1x2x32xf32> to vector<2x32xf32>
    %177 = vector.shape_cast %173 : vector<2x32xf32> to vector<1x2x32xf32>
    tpu.vector_store %arg2[%174, %c0_42, %c0_43], %177 {strides = array<i32>} : memref<8x2x32xf32, #tpu.memory_space<vmem>>, vector<1x2x32xf32>,
    %c7_i32 = arith.constant 7 : i32
    %178 = arith.index_cast %c7_i32 : i32 to index
    %c0_44 = arith.constant 0 : index
    %c0_45 = arith.constant 0 : index
    %179 = vector.load %arg0[%178, %c0_44, %c0_45] : memref<8x2x128xf32, #tpu.memory_space<vmem>>, vector<1x2x128xf32>
    %180 = vector.shape_cast %179 : vector<1x2x128xf32> to vector<2x128xf32>
    %cst_46 = arith.constant dense<0.000000e+00> : vector<2x128xf32>
    %181 = tpu.matmul %173, %0, %cst_46 {dimension_numbers = #tpu.dot_dimension_numbers<[1], [0], [0], [1], [0, 0, 1, 1], [], []>} : vector<2x32xf32>, vector<32x128xf32>, vector<2x128xf32> -> vector<2x128xf32>
    %182 = arith.addf %180, %181 : vector<2x128xf32>
    %183 = vector.extract_strided_slice %182 {offsets = [0, 0], sizes = [2, 96], strides = [1, 1]} : vector<2x128xf32> to vector<2x96xf32>
    %184 = arith.negf %183 : vector<2x96xf32>
    %185 = math.exp %184 : vector<2x96xf32>
    %cst_47 = arith.constant 1.000000e+00 : f32
    %186 = vector.broadcast %cst_47 : f32 to vector<2x96xf32>
    %187 = arith.addf %186, %185 : vector<2x96xf32>
    %188 = arith.divf %186, %187 : vector<2x96xf32>
    %189 = vector.extract_strided_slice %182 {offsets = [0, 96], sizes = [2, 32], strides = [1, 1]} : vector<2x128xf32> to vector<2x32xf32>
    %190 = math.tanh %189 : vector<2x32xf32>
    %191 = vector.extract_strided_slice %188 {offsets = [0, 0], sizes = [2, 32], strides = [1, 1]} : vector<2x96xf32> to vector<2x32xf32>
    %192 = vector.extract_strided_slice %188 {offsets = [0, 32], sizes = [2, 32], strides = [1, 1]} : vector<2x96xf32> to vector<2x32xf32>
    %193 = vector.extract_strided_slice %188 {offsets = [0, 64], sizes = [2, 32], strides = [1, 1]} : vector<2x96xf32> to vector<2x32xf32>
    %194 = arith.mulf %192, %171 : vector<2x32xf32>
    %195 = arith.mulf %191, %190 : vector<2x32xf32>
    %196 = arith.addf %194, %195 : vector<2x32xf32>
    %197 = math.tanh %196 : vector<2x32xf32>
    %198 = arith.mulf %193, %197 : vector<2x32xf32>
    %199 = arith.index_cast %c7_i32 : i32 to index
    %c0_48 = arith.constant 0 : index
    %c0_49 = arith.constant 0 : index
    %200 = vector.load %arg2[%199, %c0_48, %c0_49] : memref<8x2x32xf32, #tpu.memory_space<vmem>>, vector<1x2x32xf32>
    %201 = vector.shape_cast %200 : vector<1x2x32xf32> to vector<2x32xf32>
    %202 = vector.shape_cast %198 : vector<2x32xf32> to vector<1x2x32xf32>
    tpu.vector_store %arg2[%199, %c0_48, %c0_49], %202 {strides = array<i32>} : memref<8x2x32xf32, #tpu.memory_space<vmem>>, vector<1x2x32xf32>,
    %c8_i32 = arith.constant 8 : i32
    return
  }
}

</mosaic_0001>

<llo_original>
// kernel: question_embedding2_forward.2
$region0: #{question_embedding2_forward.2}
  #allocation0 [shape = 'u32[]', space=smem, size = 0x4, offset = 0x4, fixed_abs, tag = 'smem constant byte address 0x4 - core index']
  #allocation1 [shape = 'u32[144,128]{1,0:T(1,128)}', space=vmem, size = 0x12000, scoped, tag = 'internal scratch']
  %s0 = inlined_call_operand.vmem [shape: f32[8,2,128], index: 0, kind: input, shape index: {}]
  %s1 = inlined_call_operand.vmem [shape: f32[32,128], index: 1, kind: input, shape index: {}]
  %s2 = inlined_call_operand.vmem [shape: f32[8,2,32], index: 2, kind: output, shape index: {}]
  %s3 = sld [smem:[#allocation0]]
  $region18: #{question_embedding2_forward.2} parent=0
    _
  %s5 = ssub.s32 1, %s3
  %s6 = scalar_select 0, %s5, %s3
  // Predicated region
  $region2: #{question_embedding2_forward.2} parent=0 // pred_check
    _
  $region3: #{question_embedding2_forward.2} parent=0 // pred_check_branch
    %8 = sbr.rel (0) target = $region5
  $region4: #{question_embedding2_forward.2} parent=0 // pred_region
    _
  $region5: #{question_embedding2_forward.2} parent=0 // pred_fallthru
    _
  // Predicated region
  $region6: #{question_embedding2_forward.2} parent=0 // pred_check
    _
  $region7: #{question_embedding2_forward.2} parent=0 // pred_check_branch
    %10 = sbr.rel (0) target = $region9
  $region8: #{question_embedding2_forward.2} parent=0 // pred_region
    _
  $region9: #{question_embedding2_forward.2} parent=0 // pred_fallthru
    _
  %v11 = vld [vmem:[%s1] sm:$0xff]
  %v12 = vld [vmem:[%s1 + $0x8] sm:$0xff]
  %v13 = vld [vmem:[%s1 + $0x10] sm:$0xff]
  %v14 = vld [vmem:[%s1 + $0x18] sm:$0xff]
  %v15 = vld [vmem:[%s0] sm:$0x3]
  %vm16 = vcmask 261120
  %v18 = vsel %vm16, 0.0, 0
  %20 = vmatprep.subr.mxu0 0.0
  %21 = vmatpush1.msra.mxu0 0.0
  %22 = vmatprep.subr.mxu0 0.0
  %23 = vmatpush1.msra.mxu0 0.0
  %24 = vmatprep.subr.mxu0 0.0
  %25 = vmatpush1.msra.mxu0 0.0
  %26 = vmatprep.subr.mxu0 0.0
  %27 = vmatpush1.msra.mxu0 0.0
  %28 = vmatprep.subr.mxu0 0.0
  %29 = vmatpush1.msra.mxu0 0.0
  %30 = vmatprep.subr.mxu0 0.0
  %31 = vmatpush1.msra.mxu0 0.0
  %32 = vmatprep.subr.mxu0 0.0
  %33 = vmatpush1.msra.mxu0 0.0
  %34 = vmatprep.subr.mxu0 0.0
  %35 = vmatpush1.msra.mxu0 0.0
  %36 = vmatprep.subr.mxu0 0.0
  %37 = vmatpush1.msra.mxu0 0.0
  %38 = vmatprep.subr.mxu0 0.0
  %39 = vmatpush1.msra.mxu0 0.0
  %40 = vmatprep.subr.mxu0 0.0
  %41 = vmatpush1.msra.mxu0 0.0
  %42 = vmatprep.subr.mxu0 0.0
  %43 = vmatpush1.msra.mxu0 0.0
  %44 = vmatprep.subr.mxu0 0.0
  %45 = vmatpush1.msra.mxu0 %v14
  %46 = vmatprep.subr.mxu0 0.0
  %47 = vmatpush1.msra.mxu0 %v13
  %48 = vmatprep.subr.mxu0 0.0
  %49 = vmatpush1.msra.mxu0 %v12
  %50 = vmatprep.subr.mxu0 0.0
  %51 = vmatpush1.msra.mxu0 %v11
  %52 = vmatprep.subr.mxu0 0.0
  %53 = vmatpush2.msra.mxu0 0.0
  %54 = vmatprep.subr.mxu0 0.0
  %55 = vmatpush2.msra.mxu0 0.0
  %56 = vmatprep.subr.mxu0 0.0
  %57 = vmatpush2.msra.mxu0 0.0
  %58 = vmatprep.subr.mxu0 0.0
  %59 = vmatpush2.msra.mxu0 0.0
  %60 = vmatprep.subr.mxu0 0.0
  %61 = vmatpush2.msra.mxu0 0.0
  %62 = vmatprep.subr.mxu0 0.0
  %63 = vmatpush2.msra.mxu0 0.0
  %64 = vmatprep.subr.mxu0 0.0
  %65 = vmatpush2.msra.mxu0 0.0
  %66 = vmatprep.subr.mxu0 0.0
  %67 = vmatpush2.msra.mxu0 0.0
  %68 = vmatprep.subr.mxu0 0.0
  %69 = vmatpush2.msra.mxu0 0.0
  %70 = vmatprep.subr.mxu0 0.0
  %71 = vmatpush2.msra.mxu0 0.0
  %72 = vmatprep.subr.mxu0 0.0
  %73 = vmatpush2.msra.mxu0 0.0
  %74 = vmatprep.subr.mxu0 0.0
  %75 = vmatpush2.msra.mxu0 0.0
  %76 = vmatprep.subr.mxu0 0.0
  %77 = vmatpush2.msra.mxu0 0.0
  %78 = vmatprep.subr.mxu0 0.0
  %79 = vmatpush2.msra.mxu0 0.0
  %80 = vmatprep.subr.mxu0 0.0
  %81 = vmatpush2.msra.mxu0 0.0
  %82 = vmatprep.subr.mxu0 0.0
  %83 = vmatpush2.msra.mxu0 0.0
  %84 = vmatprep.mubr.f32.mxu0 0.0
  %85 = vmatmul.mubr.f32.gmra.mxu0 %v18
  %v86 = vpop.f32.mrf.mxu0
  %v87 = vadd.f32 0.0, %v86
  %v88 = vpop.f32.mrf.mxu0
  %89 = vdwg.mxu0
  %v90 = vadd.f32 %v15, %v87
  %v91 = vxor.u32 %v90, 2147483648
  %v92 = vmul.f32 %v91, 1.442695
  %v93 = vpow.pop %v92
  %v94 = vadd.f32 %v93, 1.0
  %v95 = vrcp.pop %v94
  %v96 = vmul.f32 1.0, %v95
  %v97 = vtanh.pop %v90
  %v98 = vmul.f32 %v96, 0.0
  %100 = vrot.lane.b32.xlu0 %v97, 32
  %v101 = vpop.permute.xlu0 %100
  %v103 = vmul.f32 %v96, %v101
  %105 = vrot.lane.b32.xlu0 %v103, 32
  %v106 = vpop.permute.xlu0 %105
  %v108 = vadd.f32 %v98, %v106
  %v109 = vtanh.pop %v108
  %111 = vrot.lane.b32.xlu0 %v109, 32
  %v112 = vpop.permute.xlu0 %111
  %v114 = vmul.f32 %v96, %v112
  %116 = vrot.lane.b32.xlu0 %v114, 64
  %v117 = vpop.permute.xlu0 %116
  %vm119 = vcmask 254976
  %120 = vst.msk [vmem:[%s2] sm:$0x3] %vm119, %v117
  %s121 = scalar_lea.vmem %s0, 2
  %v122 = vld [vmem:[%s121] sm:$0x3]
  %v123 = vsel %vm16, %v117, 0
  %125 = vmatprep.subr.mxu0 0.0
  %126 = vmatpush1.msra.mxu0 0.0
  %127 = vmatprep.subr.mxu0 0.0
  %128 = vmatpush1.msra.mxu0 0.0
  %129 = vmatprep.subr.mxu0 0.0
  %130 = vmatpush1.msra.mxu0 0.0
  %131 = vmatprep.subr.mxu0 0.0
  %132 = vmatpush1.msra.mxu0 0.0
  %133 = vmatprep.subr.mxu0 0.0
  %134 = vmatpush1.msra.mxu0 0.0
  %135 = vmatprep.subr.mxu0 0.0
  %136 = vmatpush1.msra.mxu0 0.0
  %137 = vmatprep.subr.mxu0 0.0
  %138 = vmatpush1.msra.mxu0 0.0
  %139 = vmatprep.subr.mxu0 0.0
  %140 = vmatpush1.msra.mxu0 0.0
  %141 = vmatprep.subr.mxu0 0.0
  %142 = vmatpush1.msra.mxu0 0.0
  %143 = vmatprep.subr.mxu0 0.0
  %144 = vmatpush1.msra.mxu0 0.0
  %145 = vmatprep.subr.mxu0 0.0
  %146 = vmatpush1.msra.mxu0 0.0
  %147 = vmatprep.subr.mxu0 0.0
  %148 = vmatpush1.msra.mxu0 0.0
  %149 = vmatprep.subr.mxu0 0.0
  %150 = vmatpush1.msra.mxu0 %v14
  %151 = vmatprep.subr.mxu0 0.0
  %152 = vmatpush1.msra.mxu0 %v13
  %153 = vmatprep.subr.mxu0 0.0
  %154 = vmatpush1.msra.mxu0 %v12
  %155 = vmatprep.subr.mxu0 0.0
  %156 = vmatpush1.msra.mxu0 %v11
  %157 = vmatprep.subr.mxu0 0.0
  %158 = vmatpush2.msra.mxu0 0.0
  %159 = vmatprep.subr.mxu0 0.0
  %160 = vmatpush2.msra.mxu0 0.0
  %161 = vmatprep.subr.mxu0 0.0
  %162 = vmatpush2.msra.mxu0 0.0
  %163 = vmatprep.subr.mxu0 0.0
  %164 = vmatpush2.msra.mxu0 0.0
  %165 = vmatprep.subr.mxu0 0.0
  %166 = vmatpush2.msra.mxu0 0.0
  %167 = vmatprep.subr.mxu0 0.0
  %168 = vmatpush2.msra.mxu0 0.0
  %169 = vmatprep.subr.mxu0 0.0
  %170 = vmatpush2.msra.mxu0 0.0
  %171 = vmatprep.subr.mxu0 0.0
  %172 = vmatpush2.msra.mxu0 0.0
  %173 = vmatprep.subr.mxu0 0.0
  %174 = vmatpush2.msra.mxu0 0.0
  %175 = vmatprep.subr.mxu0 0.0
  %176 = vmatpush2.msra.mxu0 0.0
  %177 = vmatprep.subr.mxu0 0.0
  %178 = vmatpush2.msra.mxu0 0.0
  %179 = vmatprep.subr.mxu0 0.0
  %180 = vmatpush2.msra.mxu0 0.0
  %181 = vmatprep.subr.mxu0 0.0
  %182 = vmatpush2.msra.mxu0 0.0
  %183 = vmatprep.subr.mxu0 0.0
  %184 = vmatpush2.msra.mxu0 0.0
  %185 = vmatprep.subr.mxu0 0.0
  %186 = vmatpush2.msra.mxu0 0.0
  %187 = vmatprep.subr.mxu0 0.0
  %188 = vmatpush2.msra.mxu0 0.0
  %189 = vmatprep.mubr.f32.mxu0 0.0
  %190 = vmatmul.mubr.f32.gmra.mxu0 %v123
  %v191 = vpop.f32.mrf.mxu0
  %v192 = vadd.f32 0.0, %v191
  %v193 = vpop.f32.mrf.mxu0
  %194 = vdwg.mxu0
  %v195 = vadd.f32 %v122, %v192
  %v196 = vxor.u32 %v195, 2147483648
  %v197 = vmul.f32 %v196, 1.442695
  %v198 = vpow.pop %v197
  %v199 = vadd.f32 %v198, 1.0
  %v200 = vrcp.pop %v199
  %v201 = vmul.f32 1.0, %v200
  %v202 = vtanh.pop %v195
  %v203 = vmul.f32 %v201, %v108
  %205 = vrot.lane.b32.xlu0 %v202, 32
  %v206 = vpop.permute.xlu0 %205
  %v208 = vmul.f32 %v201, %v206
  %210 = vrot.lane.b32.xlu0 %v208, 32
  %v211 = vpop.permute.xlu0 %210
  %v213 = vadd.f32 %v203, %v211
  %v214 = vtanh.pop %v213
  %216 = vrot.lane.b32.xlu0 %v214, 32
  %v217 = vpop.permute.xlu0 %216
  %v219 = vmul.f32 %v201, %v217
  %221 = vrot.lane.b32.xlu0 %v219, 64
  %v222 = vpop.permute.xlu0 %221
  %s224 = scalar_lea.vmem %s2, 2
  %225 = vst.msk [vmem:[%s224] sm:$0x3] %vm119, %v222
  %s226 = scalar_lea.vmem %s0, 4
  %v227 = vld [vmem:[%s226] sm:$0x3]
  %v228 = vsel %vm16, %v222, 0
  %230 = vmatprep.subr.mxu0 0.0
  %231 = vmatpush1.msra.mxu0 0.0
  %232 = vmatprep.subr.mxu0 0.0
  %233 = vmatpush1.msra.mxu0 0.0
  %234 = vmatprep.subr.mxu0 0.0
  %235 = vmatpush1.msra.mxu0 0.0
  %236 = vmatprep.subr.mxu0 0.0
  %237 = vmatpush1.msra.mxu0 0.0
  %238 = vmatprep.subr.mxu0 0.0
  %239 = vmatpush1.msra.mxu0 0.0
  %240 = vmatprep.subr.mxu0 0.0
  %241 = vmatpush1.msra.mxu0 0.0
  %242 = vmatprep.subr.mxu0 0.0
  %243 = vmatpush1.msra.mxu0 0.0
  %244 = vmatprep.subr.mxu0 0.0
  %245 = vmatpush1.msra.mxu0 0.0
  %246 = vmatprep.subr.mxu0 0.0
  %247 = vmatpush1.msra.mxu0 0.0
  %248 = vmatprep.subr.mxu0 0.0
  %249 = vmatpush1.msra.mxu0 0.0
  %250 = vmatprep.subr.mxu0 0.0
  %251 = vmatpush1.msra.mxu0 0.0
  %252 = vmatprep.subr.mxu0 0.0
  %253 = vmatpush1.msra.mxu0 0.0
  %254 = vmatprep.subr.mxu0 0.0
  %255 = vmatpush1.msra.mxu0 %v14
  %256 = vmatprep.subr.mxu0 0.0
  %257 = vmatpush1.msra.mxu0 %v13
  %258 = vmatprep.subr.mxu0 0.0
  %259 = vmatpush1.msra.mxu0 %v12
  %260 = vmatprep.subr.mxu0 0.0
  %261 = vmatpush1.msra.mxu0 %v11
  %262 = vmatprep.subr.mxu0 0.0
  %263 = vmatpush2.msra.mxu0 0.0
  %264 = vmatprep.subr.mxu0 0.0
  %265 = vmatpush2.msra.mxu0 0.0
  %266 = vmatprep.subr.mxu0 0.0
  %267 = vmatpush2.msra.mxu0 0.0
  %268 = vmatprep.subr.mxu0 0.0
  %269 = vmatpush2.msra.mxu0 0.0
  %270 = vmatprep.subr.mxu0 0.0
  %271 = vmatpush2.msra.mxu0 0.0
  %272 = vmatprep.subr.mxu0 0.0
  %273 = vmatpush2.msra.mxu0 0.0
  %274 = vmatprep.subr.mxu0 0.0
  %275 = vmatpush2.msra.mxu0 0.0
  %276 = vmatprep.subr.mxu0 0.0
  %277 = vmatpush2.msra.mxu0 0.0
  %278 = vmatprep.subr.mxu0 0.0
  %279 = vmatpush2.msra.mxu0 0.0
  %280 = vmatprep.subr.mxu0 0.0
  %281 = vmatpush2.msra.mxu0 0.0
  %282 = vmatprep.subr.mxu0 0.0
  %283 = vmatpush2.msra.mxu0 0.0
  %284 = vmatprep.subr.mxu0 0.0
  %285 = vmatpush2.msra.mxu0 0.0
  %286 = vmatprep.subr.mxu0 0.0
  %287 = vmatpush2.msra.mxu0 0.0
  %288 = vmatprep.subr.mxu0 0.0
  %289 = vmatpush2.msra.mxu0 0.0
  %290 = vmatprep.subr.mxu0 0.0
  %291 = vmatpush2.msra.mxu0 0.0
  %292 = vmatprep.subr.mxu0 0.0
  %293 = vmatpush2.msra.mxu0 0.0
  %294 = vmatprep.mubr.f32.mxu0 0.0
  %295 = vmatmul.mubr.f32.gmra.mxu0 %v228
  %v296 = vpop.f32.mrf.mxu0
  %v297 = vadd.f32 0.0, %v296
  %v298 = vpop.f32.mrf.mxu0
  %299 = vdwg.mxu0
  %v300 = vadd.f32 %v227, %v297
  %v301 = vxor.u32 %v300, 2147483648
  %v302 = vmul.f32 %v301, 1.442695
  %v303 = vpow.pop %v302
  %v304 = vadd.f32 %v303, 1.0
  %v305 = vrcp.pop %v304
  %v306 = vmul.f32 1.0, %v305
  %v307 = vtanh.pop %v300
  %v308 = vmul.f32 %v306, %v213
  %310 = vrot.lane.b32.xlu0 %v307, 32
  %v311 = vpop.permute.xlu0 %310
  %v313 = vmul.f32 %v306, %v311
  %315 = vrot.lane.b32.xlu0 %v313, 32
  %v316 = vpop.permute.xlu0 %315
  %v318 = vadd.f32 %v308, %v316
  %v319 = vtanh.pop %v318
  %321 = vrot.lane.b32.xlu0 %v319, 32
  %v322 = vpop.permute.xlu0 %321
  %v324 = vmul.f32 %v306, %v322
  %326 = vrot.lane.b32.xlu0 %v324, 64
  %v327 = vpop.permute.xlu0 %326
  %s329 = scalar_lea.vmem %s2, 4
  %330 = vst.msk [vmem:[%s329] sm:$0x3] %vm119, %v327
  %s331 = scalar_lea.vmem %s0, 6
  %v332 = vld [vmem:[%s331] sm:$0x3]
  %v333 = vsel %vm16, %v327, 0
  %335 = vmatprep.subr.mxu0 0.0
  %336 = vmatpush1.msra.mxu0 0.0
  %337 = vmatprep.subr.mxu0 0.0
  %338 = vmatpush1.msra.mxu0 0.0
  %339 = vmatprep.subr.mxu0 0.0
  %340 = vmatpush1.msra.mxu0 0.0
  %341 = vmatprep.subr.mxu0 0.0
  %342 = vmatpush1.msra.mxu0 0.0
  %343 = vmatprep.subr.mxu0 0.0
  %344 = vmatpush1.msra.mxu0 0.0
  %345 = vmatprep.subr.mxu0 0.0
  %346 = vmatpush1.msra.mxu0 0.0
  %347 = vmatprep.subr.mxu0 0.0
  %348 = vmatpush1.msra.mxu0 0.0
  %349 = vmatprep.subr.mxu0 0.0
  %350 = vmatpush1.msra.mxu0 0.0
  %351 = vmatprep.subr.mxu0 0.0
  %352 = vmatpush1.msra.mxu0 0.0
  %353 = vmatprep.subr.mxu0 0.0
  %354 = vmatpush1.msra.mxu0 0.0
  %355 = vmatprep.subr.mxu0 0.0
  %356 = vmatpush1.msra.mxu0 0.0
  %357 = vmatprep.subr.mxu0 0.0
  %358 = vmatpush1.msra.mxu0 0.0
  %359 = vmatprep.subr.mxu0 0.0
  %360 = vmatpush1.msra.mxu0 %v14
  %361 = vmatprep.subr.mxu0 0.0
  %362 = vmatpush1.msra.mxu0 %v13
  %363 = vmatprep.subr.mxu0 0.0
  %364 = vmatpush1.msra.mxu0 %v12
  %365 = vmatprep.subr.mxu0 0.0
  %366 = vmatpush1.msra.mxu0 %v11
  %367 = vmatprep.subr.mxu0 0.0
  %368 = vmatpush2.msra.mxu0 0.0
  %369 = vmatprep.subr.mxu0 0.0
  %370 = vmatpush2.msra.mxu0 0.0
  %371 = vmatprep.subr.mxu0 0.0
  %372 = vmatpush2.msra.mxu0 0.0
  %373 = vmatprep.subr.mxu0 0.0
  %374 = vmatpush2.msra.mxu0 0.0
  %375 = vmatprep.subr.mxu0 0.0
  %376 = vmatpush2.msra.mxu0 0.0
  %377 = vmatprep.subr.mxu0 0.0
  %378 = vmatpush2.msra.mxu0 0.0
  %379 = vmatprep.subr.mxu0 0.0
  %380 = vmatpush2.msra.mxu0 0.0
  %381 = vmatprep.subr.mxu0 0.0
  %382 = vmatpush2.msra.mxu0 0.0
  %383 = vmatprep.subr.mxu0 0.0
  %384 = vmatpush2.msra.mxu0 0.0
  %385 = vmatprep.subr.mxu0 0.0
  %386 = vmatpush2.msra.mxu0 0.0
  %387 = vmatprep.subr.mxu0 0.0
  %388 = vmatpush2.msra.mxu0 0.0
  %389 = vmatprep.subr.mxu0 0.0
  %390 = vmatpush2.msra.mxu0 0.0
  %391 = vmatprep.subr.mxu0 0.0
  %392 = vmatpush2.msra.mxu0 0.0
  %393 = vmatprep.subr.mxu0 0.0
  %394 = vmatpush2.msra.mxu0 0.0
  %395 = vmatprep.subr.mxu0 0.0
  %396 = vmatpush2.msra.mxu0 0.0
  %397 = vmatprep.subr.mxu0 0.0
  %398 = vmatpush2.msra.mxu0 0.0
  %399 = vmatprep.mubr.f32.mxu0 0.0
  %400 = vmatmul.mubr.f32.gmra.mxu0 %v333
  %v401 = vpop.f32.mrf.mxu0
  %v402 = vadd.f32 0.0, %v401
  %v403 = vpop.f32.mrf.mxu0
  %404 = vdwg.mxu0
  %v405 = vadd.f32 %v332, %v402
  %v406 = vxor.u32 %v405, 2147483648
  %v407 = vmul.f32 %v406, 1.442695
  %v408 = vpow.pop %v407
  %v409 = vadd.f32 %v408, 1.0
  %v410 = vrcp.pop %v409
  %v411 = vmul.f32 1.0, %v410
  %v412 = vtanh.pop %v405
  %v413 = vmul.f32 %v411, %v318
  %415 = vrot.lane.b32.xlu0 %v412, 32
  %v416 = vpop.permute.xlu0 %415
  %v418 = vmul.f32 %v411, %v416
  %420 = vrot.lane.b32.xlu0 %v418, 32
  %v421 = vpop.permute.xlu0 %420
  %v423 = vadd.f32 %v413, %v421
  %v424 = vtanh.pop %v423
  %426 = vrot.lane.b32.xlu0 %v424, 32
  %v427 = vpop.permute.xlu0 %426
  %v429 = vmul.f32 %v411, %v427
  %431 = vrot.lane.b32.xlu0 %v429, 64
  %v432 = vpop.permute.xlu0 %431
  %s434 = scalar_lea.vmem %s2, 6
  %435 = vst.msk [vmem:[%s434] sm:$0x3] %vm119, %v432
  %s436 = scalar_lea.vmem %s0, 8
  %v437 = vld [vmem:[%s436] sm:$0x3]
  %v438 = vsel %vm16, %v432, 0
  %440 = vmatprep.subr.mxu0 0.0
  %441 = vmatpush1.msra.mxu0 0.0
  %442 = vmatprep.subr.mxu0 0.0
  %443 = vmatpush1.msra.mxu0 0.0
  %444 = vmatprep.subr.mxu0 0.0
  %445 = vmatpush1.msra.mxu0 0.0
  %446 = vmatprep.subr.mxu0 0.0
  %447 = vmatpush1.msra.mxu0 0.0
  %448 = vmatprep.subr.mxu0 0.0
  %449 = vmatpush1.msra.mxu0 0.0
  %450 = vmatprep.subr.mxu0 0.0
  %451 = vmatpush1.msra.mxu0 0.0
  %452 = vmatprep.subr.mxu0 0.0
  %453 = vmatpush1.msra.mxu0 0.0
  %454 = vmatprep.subr.mxu0 0.0
  %455 = vmatpush1.msra.mxu0 0.0
  %456 = vmatprep.subr.mxu0 0.0
  %457 = vmatpush1.msra.mxu0 0.0
  %458 = vmatprep.subr.mxu0 0.0
  %459 = vmatpush1.msra.mxu0 0.0
  %460 = vmatprep.subr.mxu0 0.0
  %461 = vmatpush1.msra.mxu0 0.0
  %462 = vmatprep.subr.mxu0 0.0
  %463 = vmatpush1.msra.mxu0 0.0
  %464 = vmatprep.subr.mxu0 0.0
  %465 = vmatpush1.msra.mxu0 %v14
  %466 = vmatprep.subr.mxu0 0.0
  %467 = vmatpush1.msra.mxu0 %v13
  %468 = vmatprep.subr.mxu0 0.0
  %469 = vmatpush1.msra.mxu0 %v12
  %470 = vmatprep.subr.mxu0 0.0
  %471 = vmatpush1.msra.mxu0 %v11
  %472 = vmatprep.subr.mxu0 0.0
  %473 = vmatpush2.msra.mxu0 0.0
  %474 = vmatprep.subr.mxu0 0.0
  %475 = vmatpush2.msra.mxu0 0.0
  %476 = vmatprep.subr.mxu0 0.0
  %477 = vmatpush2.msra.mxu0 0.0
  %478 = vmatprep.subr.mxu0 0.0
  %479 = vmatpush2.msra.mxu0 0.0
  %480 = vmatprep.subr.mxu0 0.0
  %481 = vmatpush2.msra.mxu0 0.0
  %482 = vmatprep.subr.mxu0 0.0
  %483 = vmatpush2.msra.mxu0 0.0
  %484 = vmatprep.subr.mxu0 0.0
  %485 = vmatpush2.msra.mxu0 0.0
  %486 = vmatprep.subr.mxu0 0.0
  %487 = vmatpush2.msra.mxu0 0.0
  %488 = vmatprep.subr.mxu0 0.0
  %489 = vmatpush2.msra.mxu0 0.0
  %490 = vmatprep.subr.mxu0 0.0
  %491 = vmatpush2.msra.mxu0 0.0
  %492 = vmatprep.subr.mxu0 0.0
  %493 = vmatpush2.msra.mxu0 0.0
  %494 = vmatprep.subr.mxu0 0.0
  %495 = vmatpush2.msra.mxu0 0.0
  %496 = vmatprep.subr.mxu0 0.0
  %497 = vmatpush2.msra.mxu0 0.0
  %498 = vmatprep.subr.mxu0 0.0
  %499 = vmatpush2.msra.mxu0 0.0
  %500 = vmatprep.subr.mxu0 0.0
  %501 = vmatpush2.msra.mxu0 0.0
  %502 = vmatprep.subr.mxu0 0.0
  %503 = vmatpush2.msra.mxu0 0.0
  %504 = vmatprep.mubr.f32.mxu0 0.0
  %505 = vmatmul.mubr.f32.gmra.mxu0 %v438
  %v506 = vpop.f32.mrf.mxu0
  %v507 = vadd.f32 0.0, %v506
  %v508 = vpop.f32.mrf.mxu0
  %509 = vdwg.mxu0
  %v510 = vadd.f32 %v437, %v507
  %v511 = vxor.u32 %v510, 2147483648
  %v512 = vmul.f32 %v511, 1.442695
  %v513 = vpow.pop %v512
  %v514 = vadd.f32 %v513, 1.0
  %v515 = vrcp.pop %v514
  %v516 = vmul.f32 1.0, %v515
  %v517 = vtanh.pop %v510
  %v518 = vmul.f32 %v516, %v423
  %520 = vrot.lane.b32.xlu0 %v517, 32
  %v521 = vpop.permute.xlu0 %520
  %v523 = vmul.f32 %v516, %v521
  %525 = vrot.lane.b32.xlu0 %v523, 32
  %v526 = vpop.permute.xlu0 %525
  %v528 = vadd.f32 %v518, %v526
  %v529 = vtanh.pop %v528
  %531 = vrot.lane.b32.xlu0 %v529, 32
  %v532 = vpop.permute.xlu0 %531
  %v534 = vmul.f32 %v516, %v532
  %536 = vrot.lane.b32.xlu0 %v534, 64
  %v537 = vpop.permute.xlu0 %536
  %s539 = scalar_lea.vmem %s2, 8
  %540 = vst.msk [vmem:[%s539] sm:$0x3] %vm119, %v537
  %s541 = scalar_lea.vmem %s0, 10
  %v542 = vld [vmem:[%s541] sm:$0x3]
  %v543 = vsel %vm16, %v537, 0
  %545 = vmatprep.subr.mxu0 0.0
  %546 = vmatpush1.msra.mxu0 0.0
  %547 = vmatprep.subr.mxu0 0.0
  %548 = vmatpush1.msra.mxu0 0.0
  %549 = vmatprep.subr.mxu0 0.0
  %550 = vmatpush1.msra.mxu0 0.0
  %551 = vmatprep.subr.mxu0 0.0
  %552 = vmatpush1.msra.mxu0 0.0
  %553 = vmatprep.subr.mxu0 0.0
  %554 = vmatpush1.msra.mxu0 0.0
  %555 = vmatprep.subr.mxu0 0.0
  %556 = vmatpush1.msra.mxu0 0.0
  %557 = vmatprep.subr.mxu0 0.0
  %558 = vmatpush1.msra.mxu0 0.0
  %559 = vmatprep.subr.mxu0 0.0
  %560 = vmatpush1.msra.mxu0 0.0
  %561 = vmatprep.subr.mxu0 0.0
  %562 = vmatpush1.msra.mxu0 0.0
  %563 = vmatprep.subr.mxu0 0.0
  %564 = vmatpush1.msra.mxu0 0.0
  %565 = vmatprep.subr.mxu0 0.0
  %566 = vmatpush1.msra.mxu0 0.0
  %567 = vmatprep.subr.mxu0 0.0
  %568 = vmatpush1.msra.mxu0 0.0
  %569 = vmatprep.subr.mxu0 0.0
  %570 = vmatpush1.msra.mxu0 %v14
  %571 = vmatprep.subr.mxu0 0.0
  %572 = vmatpush1.msra.mxu0 %v13
  %573 = vmatprep.subr.mxu0 0.0
  %574 = vmatpush1.msra.mxu0 %v12
  %575 = vmatprep.subr.mxu0 0.0
  %576 = vmatpush1.msra.mxu0 %v11
  %577 = vmatprep.subr.mxu0 0.0
  %578 = vmatpush2.msra.mxu0 0.0
  %579 = vmatprep.subr.mxu0 0.0
  %580 = vmatpush2.msra.mxu0 0.0
  %581 = vmatprep.subr.mxu0 0.0
  %582 = vmatpush2.msra.mxu0 0.0
  %583 = vmatprep.subr.mxu0 0.0
  %584 = vmatpush2.msra.mxu0 0.0
  %585 = vmatprep.subr.mxu0 0.0
  %586 = vmatpush2.msra.mxu0 0.0
  %587 = vmatprep.subr.mxu0 0.0
  %588 = vmatpush2.msra.mxu0 0.0
  %589 = vmatprep.subr.mxu0 0.0
  %590 = vmatpush2.msra.mxu0 0.0
  %591 = vmatprep.subr.mxu0 0.0
  %592 = vmatpush2.msra.mxu0 0.0
  %593 = vmatprep.subr.mxu0 0.0
  %594 = vmatpush2.msra.mxu0 0.0
  %595 = vmatprep.subr.mxu0 0.0
  %596 = vmatpush2.msra.mxu0 0.0
  %597 = vmatprep.subr.mxu0 0.0
  %598 = vmatpush2.msra.mxu0 0.0
  %599 = vmatprep.subr.mxu0 0.0
  %600 = vmatpush2.msra.mxu0 0.0
  %601 = vmatprep.subr.mxu0 0.0
  %602 = vmatpush2.msra.mxu0 0.0
  %603 = vmatprep.subr.mxu0 0.0
  %604 = vmatpush2.msra.mxu0 0.0
  %605 = vmatprep.subr.mxu0 0.0
  %606 = vmatpush2.msra.mxu0 0.0
  %607 = vmatprep.subr.mxu0 0.0
  %608 = vmatpush2.msra.mxu0 0.0
  %609 = vmatprep.mubr.f32.mxu0 0.0
  %610 = vmatmul.mubr.f32.gmra.mxu0 %v543
  %v611 = vpop.f32.mrf.mxu0
  %v612 = vadd.f32 0.0, %v611
  %v613 = vpop.f32.mrf.mxu0
  %614 = vdwg.mxu0
  %v615 = vadd.f32 %v542, %v612
  %v616 = vxor.u32 %v615, 2147483648
  %v617 = vmul.f32 %v616, 1.442695
  %v618 = vpow.pop %v617
  %v619 = vadd.f32 %v618, 1.0
  %v620 = vrcp.pop %v619
  %v621 = vmul.f32 1.0, %v620
  %v622 = vtanh.pop %v615
  %v623 = vmul.f32 %v621, %v528
  %625 = vrot.lane.b32.xlu0 %v622, 32
  %v626 = vpop.permute.xlu0 %625
  %v628 = vmul.f32 %v621, %v626
  %630 = vrot.lane.b32.xlu0 %v628, 32
  %v631 = vpop.permute.xlu0 %630
  %v633 = vadd.f32 %v623, %v631
  %v634 = vtanh.pop %v633
  %636 = vrot.lane.b32.xlu0 %v634, 32
  %v637 = vpop.permute.xlu0 %636
  %v639 = vmul.f32 %v621, %v637
  %641 = vrot.lane.b32.xlu0 %v639, 64
  %v642 = vpop.permute.xlu0 %641
  %s644 = scalar_lea.vmem %s2, 10
  %645 = vst.msk [vmem:[%s644] sm:$0x3] %vm119, %v642
  %s646 = scalar_lea.vmem %s0, 12
  %v647 = vld [vmem:[%s646] sm:$0x3]
  %v648 = vsel %vm16, %v642, 0
  %650 = vmatprep.subr.mxu0 0.0
  %651 = vmatpush1.msra.mxu0 0.0
  %652 = vmatprep.subr.mxu0 0.0
  %653 = vmatpush1.msra.mxu0 0.0
  %654 = vmatprep.subr.mxu0 0.0
  %655 = vmatpush1.msra.mxu0 0.0
  %656 = vmatprep.subr.mxu0 0.0
  %657 = vmatpush1.msra.mxu0 0.0
  %658 = vmatprep.subr.mxu0 0.0
  %659 = vmatpush1.msra.mxu0 0.0
  %660 = vmatprep.subr.mxu0 0.0
  %661 = vmatpush1.msra.mxu0 0.0
  %662 = vmatprep.subr.mxu0 0.0
  %663 = vmatpush1.msra.mxu0 0.0
  %664 = vmatprep.subr.mxu0 0.0
  %665 = vmatpush1.msra.mxu0 0.0
  %666 = vmatprep.subr.mxu0 0.0
  %667 = vmatpush1.msra.mxu0 0.0
  %668 = vmatprep.subr.mxu0 0.0
  %669 = vmatpush1.msra.mxu0 0.0
  %670 = vmatprep.subr.mxu0 0.0
  %671 = vmatpush1.msra.mxu0 0.0
  %672 = vmatprep.subr.mxu0 0.0
  %673 = vmatpush1.msra.mxu0 0.0
  %674 = vmatprep.subr.mxu0 0.0
  %675 = vmatpush1.msra.mxu0 %v14
  %676 = vmatprep.subr.mxu0 0.0
  %677 = vmatpush1.msra.mxu0 %v13
  %678 = vmatprep.subr.mxu0 0.0
  %679 = vmatpush1.msra.mxu0 %v12
  %680 = vmatprep.subr.mxu0 0.0
  %681 = vmatpush1.msra.mxu0 %v11
  %682 = vmatprep.subr.mxu0 0.0
  %683 = vmatpush2.msra.mxu0 0.0
  %684 = vmatprep.subr.mxu0 0.0
  %685 = vmatpush2.msra.mxu0 0.0
  %686 = vmatprep.subr.mxu0 0.0
  %687 = vmatpush2.msra.mxu0 0.0
  %688 = vmatprep.subr.mxu0 0.0
  %689 = vmatpush2.msra.mxu0 0.0
  %690 = vmatprep.subr.mxu0 0.0
  %691 = vmatpush2.msra.mxu0 0.0
  %692 = vmatprep.subr.mxu0 0.0
  %693 = vmatpush2.msra.mxu0 0.0
  %694 = vmatprep.subr.mxu0 0.0
  %695 = vmatpush2.msra.mxu0 0.0
  %696 = vmatprep.subr.mxu0 0.0
  %697 = vmatpush2.msra.mxu0 0.0
  %698 = vmatprep.subr.mxu0 0.0
  %699 = vmatpush2.msra.mxu0 0.0
  %700 = vmatprep.subr.mxu0 0.0
  %701 = vmatpush2.msra.mxu0 0.0
  %702 = vmatprep.subr.mxu0 0.0
  %703 = vmatpush2.msra.mxu0 0.0
  %704 = vmatprep.subr.mxu0 0.0
  %705 = vmatpush2.msra.mxu0 0.0
  %706 = vmatprep.subr.mxu0 0.0
  %707 = vmatpush2.msra.mxu0 0.0
  %708 = vmatprep.subr.mxu0 0.0
  %709 = vmatpush2.msra.mxu0 0.0
  %710 = vmatprep.subr.mxu0 0.0
  %711 = vmatpush2.msra.mxu0 0.0
  %712 = vmatprep.subr.mxu0 0.0
  %713 = vmatpush2.msra.mxu0 0.0
  %714 = vmatprep.mubr.f32.mxu0 0.0
  %715 = vmatmul.mubr.f32.gmra.mxu0 %v648
  %v716 = vpop.f32.mrf.mxu0
  %v717 = vadd.f32 0.0, %v716
  %v718 = vpop.f32.mrf.mxu0
  %719 = vdwg.mxu0
  %v720 = vadd.f32 %v647, %v717
  %v721 = vxor.u32 %v720, 2147483648
  %v722 = vmul.f32 %v721, 1.442695
  %v723 = vpow.pop %v722
  %v724 = vadd.f32 %v723, 1.0
  %v725 = vrcp.pop %v724
  %v726 = vmul.f32 1.0, %v725
  %v727 = vtanh.pop %v720
  %v728 = vmul.f32 %v726, %v633
  %730 = vrot.lane.b32.xlu0 %v727, 32
  %v731 = vpop.permute.xlu0 %730
  %v733 = vmul.f32 %v726, %v731
  %735 = vrot.lane.b32.xlu0 %v733, 32
  %v736 = vpop.permute.xlu0 %735
  %v738 = vadd.f32 %v728, %v736
  %v739 = vtanh.pop %v738
  %741 = vrot.lane.b32.xlu0 %v739, 32
  %v742 = vpop.permute.xlu0 %741
  %v744 = vmul.f32 %v726, %v742
  %746 = vrot.lane.b32.xlu0 %v744, 64
  %v747 = vpop.permute.xlu0 %746
  %s749 = scalar_lea.vmem %s2, 12
  %750 = vst.msk [vmem:[%s749] sm:$0x3] %vm119, %v747
  %s751 = scalar_lea.vmem %s0, 14
  %v752 = vld [vmem:[%s751] sm:$0x3]
  %v753 = vsel %vm16, %v747, 0
  %755 = vmatprep.subr.mxu0 0.0
  %756 = vmatpush1.msra.mxu0 0.0
  %757 = vmatprep.subr.mxu0 0.0
  %758 = vmatpush1.msra.mxu0 0.0
  %759 = vmatprep.subr.mxu0 0.0
  %760 = vmatpush1.msra.mxu0 0.0
  %761 = vmatprep.subr.mxu0 0.0
  %762 = vmatpush1.msra.mxu0 0.0
  %763 = vmatprep.subr.mxu0 0.0
  %764 = vmatpush1.msra.mxu0 0.0
  %765 = vmatprep.subr.mxu0 0.0
  %766 = vmatpush1.msra.mxu0 0.0
  %767 = vmatprep.subr.mxu0 0.0
  %768 = vmatpush1.msra.mxu0 0.0
  %769 = vmatprep.subr.mxu0 0.0
  %770 = vmatpush1.msra.mxu0 0.0
  %771 = vmatprep.subr.mxu0 0.0
  %772 = vmatpush1.msra.mxu0 0.0
  %773 = vmatprep.subr.mxu0 0.0
  %774 = vmatpush1.msra.mxu0 0.0
  %775 = vmatprep.subr.mxu0 0.0
  %776 = vmatpush1.msra.mxu0 0.0
  %777 = vmatprep.subr.mxu0 0.0
  %778 = vmatpush1.msra.mxu0 0.0
  %779 = vmatprep.subr.mxu0 0.0
  %780 = vmatpush1.msra.mxu0 %v14
  %781 = vmatprep.subr.mxu0 0.0
  %782 = vmatpush1.msra.mxu0 %v13
  %783 = vmatprep.subr.mxu0 0.0
  %784 = vmatpush1.msra.mxu0 %v12
  %785 = vmatprep.subr.mxu0 0.0
  %786 = vmatpush1.msra.mxu0 %v11
  %787 = vmatprep.subr.mxu0 0.0
  %788 = vmatpush2.msra.mxu0 0.0
  %789 = vmatprep.subr.mxu0 0.0
  %790 = vmatpush2.msra.mxu0 0.0
  %791 = vmatprep.subr.mxu0 0.0
  %792 = vmatpush2.msra.mxu0 0.0
  %793 = vmatprep.subr.mxu0 0.0
  %794 = vmatpush2.msra.mxu0 0.0
  %795 = vmatprep.subr.mxu0 0.0
  %796 = vmatpush2.msra.mxu0 0.0
  %797 = vmatprep.subr.mxu0 0.0
  %798 = vmatpush2.msra.mxu0 0.0
  %799 = vmatprep.subr.mxu0 0.0
  %800 = vmatpush2.msra.mxu0 0.0
  %801 = vmatprep.subr.mxu0 0.0
  %802 = vmatpush2.msra.mxu0 0.0
  %803 = vmatprep.subr.mxu0 0.0
  %804 = vmatpush2.msra.mxu0 0.0
  %805 = vmatprep.subr.mxu0 0.0
  %806 = vmatpush2.msra.mxu0 0.0
  %807 = vmatprep.subr.mxu0 0.0
  %808 = vmatpush2.msra.mxu0 0.0
  %809 = vmatprep.subr.mxu0 0.0
  %810 = vmatpush2.msra.mxu0 0.0
  %811 = vmatprep.subr.mxu0 0.0
  %812 = vmatpush2.msra.mxu0 0.0
  %813 = vmatprep.subr.mxu0 0.0
  %814 = vmatpush2.msra.mxu0 0.0
  %815 = vmatprep.subr.mxu0 0.0
  %816 = vmatpush2.msra.mxu0 0.0
  %817 = vmatprep.subr.mxu0 0.0
  %818 = vmatpush2.msra.mxu0 0.0
  %819 = vmatprep.mubr.f32.mxu0 0.0
  %820 = vmatmul.mubr.f32.gmra.mxu0 %v753
  %v821 = vpop.f32.mrf.mxu0
  %v822 = vadd.f32 0.0, %v821
  %v823 = vpop.f32.mrf.mxu0
  %824 = vdwg.mxu0
  %v825 = vadd.f32 %v752, %v822
  %v826 = vxor.u32 %v825, 2147483648
  %v827 = vmul.f32 %v826, 1.442695
  %v828 = vpow.pop %v827
  %v829 = vadd.f32 %v828, 1.0
  %v830 = vrcp.pop %v829
  %v831 = vmul.f32 1.0, %v830
  %v832 = vtanh.pop %v825
  %v833 = vmul.f32 %v831, %v738
  %835 = vrot.lane.b32.xlu0 %v832, 32
  %v836 = vpop.permute.xlu0 %835
  %v838 = vmul.f32 %v831, %v836
  %840 = vrot.lane.b32.xlu0 %v838, 32
  %v841 = vpop.permute.xlu0 %840
  %v843 = vadd.f32 %v833, %v841
  %v844 = vtanh.pop %v843
  %846 = vrot.lane.b32.xlu0 %v844, 32
  %v847 = vpop.permute.xlu0 %846
  %v849 = vmul.f32 %v831, %v847
  %851 = vrot.lane.b32.xlu0 %v849, 64
  %v852 = vpop.permute.xlu0 %851
  %s854 = scalar_lea.vmem %s2, 14
  %855 = vst.msk [vmem:[%s854] sm:$0x3] %vm119, %v852
  // Predicated region
  $region10: #{question_embedding2_forward.2} parent=0 // pred_check
    _
  $region11: #{question_embedding2_forward.2} parent=0 // pred_check_branch
    %857 = sbr.rel (0) target = $region13
  $region12: #{question_embedding2_forward.2} parent=0 // pred_region
    _
  $region13: #{question_embedding2_forward.2} parent=0 // pred_fallthru
    _
  // Predicated region
  $region14: #{question_embedding2_forward.2} parent=0 // pred_check
    _
  $region15: #{question_embedding2_forward.2} parent=0 // pred_check_branch
    %859 = sbr.rel (0) target = $region17
  $region16: #{question_embedding2_forward.2} parent=0 // pred_region
    _
  $region17: #{question_embedding2_forward.2} parent=0 // pred_fallthru
    _

</llo_original>
